<compile_context>
chip_gen: v7x
topology: tpu7x:2x2x1
jax: 0.10.0
libtpu: 0.0.40
codegen_flags: <defaults>
</compile_context>

<pallas_src>
from functools import partial

import jax
import jax.numpy as jnp
from jax.experimental import pallas as pl
from jax.experimental.pallas import tpu as pltpu


# ----------------------------- small helpers --------------------------------

def _pair(v):
    return (v, v) if isinstance(v, int) else tuple(v)


def _quadruple(v):
    return (v, v, v, v) if isinstance(v, int) else tuple(v)


def _compute_padding(H, W, kh, kw, sh, sw, padding, same):
    """Mirror of MedianPool2d._padding -> (left, right, top, bottom)."""
    if same:
        ph = max(kh - sh, 0) if H % sh == 0 else max(kh - H % sh, 0)
        pw = max(kw - sw, 0) if W % sw == 0 else max(kw - W % sw, 0)
        return pw // 2, pw - pw // 2, ph // 2, ph - ph // 2
    return _quadruple(padding)


def _reflect_index(idx, size):
    """Map (possibly out-of-range) indices to 'reflect' (no edge repeat)."""
    idx = jnp.abs(idx)
    return jnp.where(idx >= size, 2 * (size - 1) - idx, idx)


def _sort2(a, b):
    return jnp.minimum(a, b), jnp.maximum(a, b)


def _med3(a, b, c):
    return jnp.maximum(jnp.minimum(a, b), jnp.minimum(jnp.maximum(a, b), c))


# --------------------- selection networks (generic path) --------------------

def _batcher_pairs(n):
    """Comparator pairs of Batcher's odd-even mergesort for n items."""
    t = 1
    while t < n:
        t *= 2
    pairs = []
    p = 1
    while p < t:
        k = p
        while k >= 1:
            for j in range(k % p, t - k, 2 * k):
                for i in range(min(k, t - j - k)):
                    a, b = i + j, i + j + k
                    # skip comparators touching virtual +inf padding (>= n)
                    if (a // (2 * p)) == (b // (2 * p)) and b < n:
                        pairs.append((a, b))
            k //= 2
        p *= 2
    return pairs


def _prune_for_rank(pairs, rank):
    """Keep only comparators in the backward cone of influence of `rank`."""
    needed = {rank}
    kept = []
    for a, b in reversed(pairs):
        if a in needed or b in needed:
            kept.append((a, b))
            needed.add(a)
            needed.add(b)
    kept.reverse()
    return kept


# ------------------------------- the kernel ---------------------------------

def _make_kernel(kh, kw, sh, sw, Rq, Wq, t_ho, Wo):
    """Kernel over one (row-block, plane-block) tile.

    x_ref: (sh*Rq, sw*Wq, nc_b)  phase-split input rows/cols, planes on lanes.
    o_ref: (t_ho, Wo, nc_b)      strided median output.
    """

    def row_tap(x_ref, dy):
        r0 = (dy % sh) * Rq + dy // sh
        return x_ref[r0:r0 + t_ho, :, :]            # (t_ho, sw*Wq, nc)

    def col_sel(v, dx):
        c0 = (dx % sw) * Wq + dx // sw
        return v[:, c0:c0 + Wo, :]                   # (t_ho, Wo, nc)

    if kh == 3 and kw == 3:
        def kernel(x_ref, o_ref):
            # Sorted vertical triples, shared across the 3 horizontal taps.
            a, b, c = row_tap(x_ref, 0), row_tap(x_ref, 1), row_tap(x_ref, 2)
            a, b = _sort2(a, b)
            b, c = _sort2(b, c)
            a, b = _sort2(a, b)                      # a<=b<=c per column
            lo = jnp.maximum(jnp.maximum(col_sel(a, 0), col_sel(a, 1)),
                             col_sel(a, 2))
            mid = _med3(col_sel(b, 0), col_sel(b, 1), col_sel(b, 2))
            hi = jnp.minimum(jnp.minimum(col_sel(c, 0), col_sel(c, 1)),
                             col_sel(c, 2))
            o_ref[...] = _med3(lo, mid, hi).astype(o_ref.dtype)
        return kernel

    kk = kh * kw
    rank = (kk - 1) // 2                             # torch lower median
    pairs = _prune_for_rank(_batcher_pairs(kk), rank)

    def kernel(x_ref, o_ref):
        rows = [row_tap(x_ref, dy) for dy in range(kh)]
        taps = [col_sel(rows[dy], dx) for dy in range(kh) for dx in range(kw)]
        for i, j in pairs:
            taps[i], taps[j] = _sort2(taps[i], taps[j])
        o_ref[...] = taps[rank].astype(o_ref.dtype)

    return kernel


# -------------------------------- wrapper ------------------------------------

def median_pool2d(x, kernel_size=3, stride=1, padding=0, same=False):
    """MedianPool2d.forward for NCHW input, computed with a Pallas TPU kernel."""
    N, C, H, W = x.shape
    kh, kw = _pair(kernel_size)
    sh, sw = _pair(stride)
    p_l, p_r, p_t, p_b = _compute_padding(H, W, kh, kw, sh, sw, padding, same)

    NC = N * C
    Hp, Wp = H + p_t + p_b, W + p_l + p_r
    Ho, Wo = (Hp - kh) // sh + 1, (Wp - kw) // sw + 1
    itemsize = x.dtype.itemsize

    # ---- block sizing (generation aware, multi-step grid) ----
    nc_b = NC if NC <= 128 else 128                  # lane block (mult of 128 or full)
    n_nc = -(-NC // nc_b)
    try:
        vmem_cap = int(pltpu.get_tpu_info().vmem_capacity_bytes)
    except Exception:
        vmem_cap = 64 << 20                          # conservative (v7x per-TC)
    ws_budget = min(vmem_cap // 3, 40 << 20)         # VMEM working-set budget
    Wq = Wo + (kw - 1) // sw                         # per-phase columns kept
    bytes_per_out_row = (sh * sw * Wq + Wo) * nc_b * itemsize
    live_mult = 6 if (kh == 3 and kw == 3) else (kh * kw // 2 + 6)
    t_ho = max(1, min(Ho, ws_budget // max(1, live_mult * bytes_per_out_row)))
    target_steps = 8                                 # pipelining + megacore
    if n_nc * (-(-Ho // t_ho)) < target_steps:
        needed_rb = max(1, -(-target_steps // n_nc))
        t_ho = min(t_ho, max(1, -(-Ho // needed_rb)))
    n_rb = -(-Ho // t_ho)
    Rq = t_ho + (kh - 1) // sh                       # input rows kept per phase

    # ---- one-pass gather: reflect pad + planes-last + row halo + stride phases
    rb = jnp.arange(n_rb, dtype=jnp.int32)
    row_pad = ((sh * t_ho) * rb[:, None, None]
               + sh * jnp.arange(Rq, dtype=jnp.int32)[None, None, :]
               + jnp.arange(sh, dtype=jnp.int32)[None, :, None])   # (n_rb, sh, Rq)
    row_src = _reflect_index(jnp.minimum(row_pad, Hp - 1) - p_t, H)
    col_pad = (sw * jnp.arange(Wq, dtype=jnp.int32)[None, :]
               + jnp.arange(sw, dtype=jnp.int32)[:, None])          # (sw, Wq)
    col_src = _reflect_index(jnp.minimum(col_pad, Wp - 1) - p_l, W)

    xr = x.reshape(NC, H, W)
    xg = jnp.take(xr, row_src.reshape(-1), axis=1)
    xg = jnp.take(xg, col_src.reshape(-1), axis=2)
    xg = xg.reshape(NC, n_rb, sh * Rq, sw * Wq)
    xg = jnp.transpose(xg, (1, 2, 3, 0))             # (n_rb, sh*Rq, sw*Wq, NC)

    in_block = (sh * Rq) * (sw * Wq) * nc_b * itemsize
    out_block = t_ho * Wo * nc_b * itemsize
    vmem_limit = int(min(max(2 * ws_budget, 2 * (in_block + out_block) + (16 << 20)),
                         min(vmem_cap // 2, 64 << 20)))

    kernel = _make_kernel(kh, kw, sh, sw, Rq, Wq, t_ho, Wo)

    out = pl.pallas_call(
        kernel,
        out_shape=jax.ShapeDtypeStruct((Ho, Wo, NC), x.dtype),
        grid=(n_rb, n_nc),
        in_specs=[pl.BlockSpec((None, sh * Rq, sw * Wq, nc_b),
                               lambda r, c: (r, 0, 0, c))],
        out_specs=pl.BlockSpec((t_ho, Wo, nc_b), lambda r, c: (r, 0, c)),
        compiler_params=pltpu.CompilerParams(
            dimension_semantics=("parallel", "parallel"),
            vmem_limit_bytes=vmem_limit,
        ),
    )(xg)

    return jnp.transpose(out, (2, 0, 1)).reshape(N, C, Ho, Wo)


# ------------------------------ pure-JAX reference --------------------------

def _reference_median_pool(x, kernel_size=3, stride=1, padding=0, same=False):
    N, C, H, W = x.shape
    kh, kw = _pair(kernel_size)
    sh, sw = _pair(stride)
    p_l, p_r, p_t, p_b = _compute_padding(H, W, kh, kw, sh, sw, padding, same)
    xp = jnp.pad(x, ((0, 0), (0, 0), (p_t, p_b), (p_l, p_r)), mode="reflect")
    Hp, Wp = H + p_t + p_b, W + p_l + p_r
    Ho, Wo = (Hp - kh) // sh + 1, (Wp - kw) // sw + 1
    wins = jnp.stack(
        [xp[:, :, dy:dy + sh * (Ho - 1) + 1:sh, dx:dx + sw * (Wo - 1) + 1:sw]
         for dy in range(kh) for dx in range(kw)],
        axis=-1,
    )
    return jnp.sort(wins, axis=-1)[..., (kh * kw - 1) // 2]


# ----------------------------------- main ------------------------------------

if __name__ == "__main__":
    key = jax.random.PRNGKey(0)
    N, C, H, W = 2, 4, 16, 16
    x = jax.random.normal(key, (N, C, H, W), jnp.float32)

    # Default module config (3x3 median filter, same padding).
    f1 = jax.jit(partial(median_pool2d, kernel_size=3, stride=1, same=True))
    out = jax.block_until_ready(f1(x))
    ref = _reference_median_pool(x, kernel_size=3, stride=1, same=True)
    assert out.shape == (N, C, H, W), out.shape
    assert jnp.allclose(out, ref), f"max abs err {jnp.max(jnp.abs(out - ref))}"

    # Strided + explicit padding: exercises in-kernel stride (phase split).
    f2 = jax.jit(partial(median_pool2d, kernel_size=3, stride=2, padding=1,
                         same=False))
    out2 = jax.block_until_ready(f2(x))
    ref2 = _reference_median_pool(x, kernel_size=3, stride=2, padding=1,
                                  same=False)
    assert out2.shape == ref2.shape, (out2.shape, ref2.shape)
    assert jnp.allclose(out2, ref2), \
        f"max abs err {jnp.max(jnp.abs(out2 - ref2))}"

    # Non-3x3 window: exercises the pruned-Batcher lower-median path.
    f3 = jax.jit(partial(median_pool2d, kernel_size=2, stride=1, padding=0,
                         same=False))
    out3 = jax.block_until_ready(f3(x))
    ref3 = _reference_median_pool(x, kernel_size=2, stride=1, padding=0,
                                  same=False)
    assert out3.shape == ref3.shape, (out3.shape, ref3.shape)
    assert jnp.allclose(out3, ref3), \
        f"max abs err {jnp.max(jnp.abs(out3 - ref3))}"

    print("KERNEL_OK")
</pallas_src>

<mosaic_0001>
module attributes {stable_mosaic.version = 11 : i64} {
  func.func @kernel(%arg0: i32, %arg1: i32, %arg2: memref<1x4x18x8xf32, #tpu.memory_space<vmem>>, %arg3: memref<2x16x8xf32, #tpu.memory_space<vmem>>) attributes {dimension_semantics = [#tpu.dimension_semantics<parallel>, #tpu.dimension_semantics<parallel>], iteration_bounds = array<i64: 8, 1>, scalar_prefetch = 0 : i64, scratch_operands = 0 : i64, tpu.core_type = #tpu.core_type<tc>, window_params = [{transform_indices = @transform_0, window_bounds = array<i64: 1, 4, 18, 8>}, {transform_indices = @transform_1, window_bounds = array<i64: 2, 16, 8>}]} {
    %c0 = arith.constant 0 : index
    %c0_0 = arith.constant 0 : index
    %c0_1 = arith.constant 0 : index
    %c0_2 = arith.constant 0 : index
    %0 = vector.load %arg2[%c0, %c0_0, %c0_1, %c0_2] : memref<1x4x18x8xf32, #tpu.memory_space<vmem>>, vector<1x2x18x8xf32>
    %1 = vector.shape_cast %0 : vector<1x2x18x8xf32> to vector<2x18x8xf32>
    %c0_3 = arith.constant 0 : index
    %c1 = arith.constant 1 : index
    %c0_4 = arith.constant 0 : index
    %c0_5 = arith.constant 0 : index
    %2 = vector.load %arg2[%c0_3, %c1, %c0_4, %c0_5] : memref<1x4x18x8xf32, #tpu.memory_space<vmem>>, vector<1x2x18x8xf32>
    %3 = vector.shape_cast %2 : vector<1x2x18x8xf32> to vector<2x18x8xf32>
    %c0_6 = arith.constant 0 : index
    %c2 = arith.constant 2 : index
    %c0_7 = arith.constant 0 : index
    %c0_8 = arith.constant 0 : index
    %4 = vector.load %arg2[%c0_6, %c2, %c0_7, %c0_8] : memref<1x4x18x8xf32, #tpu.memory_space<vmem>>, vector<1x2x18x8xf32>
    %5 = vector.shape_cast %4 : vector<1x2x18x8xf32> to vector<2x18x8xf32>
    %6 = arith.minimumf %1, %3 : vector<2x18x8xf32>
    %7 = arith.maximumf %1, %3 : vector<2x18x8xf32>
    %8 = arith.minimumf %7, %5 : vector<2x18x8xf32>
    %9 = arith.maximumf %7, %5 : vector<2x18x8xf32>
    %10 = arith.minimumf %6, %8 : vector<2x18x8xf32>
    %11 = arith.maximumf %6, %8 : vector<2x18x8xf32>
    %12 = vector.extract_strided_slice %10 {offsets = [0, 0, 0], sizes = [2, 16, 8], strides = [1, 1, 1]} : vector<2x18x8xf32> to vector<2x16x8xf32>
    %13 = vector.extract_strided_slice %10 {offsets = [0, 1, 0], sizes = [2, 16, 8], strides = [1, 1, 1]} : vector<2x18x8xf32> to vector<2x16x8xf32>
    %14 = arith.maximumf %12, %13 : vector<2x16x8xf32>
    %15 = vector.extract_strided_slice %10 {offsets = [0, 2, 0], sizes = [2, 16, 8], strides = [1, 1, 1]} : vector<2x18x8xf32> to vector<2x16x8xf32>
    %16 = arith.maximumf %14, %15 : vector<2x16x8xf32>
    %17 = vector.extract_strided_slice %11 {offsets = [0, 0, 0], sizes = [2, 16, 8], strides = [1, 1, 1]} : vector<2x18x8xf32> to vector<2x16x8xf32>
    %18 = vector.extract_strided_slice %11 {offsets = [0, 1, 0], sizes = [2, 16, 8], strides = [1, 1, 1]} : vector<2x18x8xf32> to vector<2x16x8xf32>
    %19 = vector.extract_strided_slice %11 {offsets = [0, 2, 0], sizes = [2, 16, 8], strides = [1, 1, 1]} : vector<2x18x8xf32> to vector<2x16x8xf32>
    %20 = arith.minimumf %17, %18 : vector<2x16x8xf32>
    %21 = arith.maximumf %17, %18 : vector<2x16x8xf32>
    %22 = arith.minimumf %21, %19 : vector<2x16x8xf32>
    %23 = arith.maximumf %20, %22 : vector<2x16x8xf32>
    %24 = vector.extract_strided_slice %9 {offsets = [0, 0, 0], sizes = [2, 16, 8], strides = [1, 1, 1]} : vector<2x18x8xf32> to vector<2x16x8xf32>
    %25 = vector.extract_strided_slice %9 {offsets = [0, 1, 0], sizes = [2, 16, 8], strides = [1, 1, 1]} : vector<2x18x8xf32> to vector<2x16x8xf32>
    %26 = arith.minimumf %24, %25 : vector<2x16x8xf32>
    %27 = vector.extract_strided_slice %9 {offsets = [0, 2, 0], sizes = [2, 16, 8], strides = [1, 1, 1]} : vector<2x18x8xf32> to vector<2x16x8xf32>
    %28 = arith.minimumf %26, %27 : vector<2x16x8xf32>
    %29 = arith.minimumf %16, %23 : vector<2x16x8xf32>
    %30 = arith.maximumf %16, %23 : vector<2x16x8xf32>
    %31 = arith.minimumf %30, %28 : vector<2x16x8xf32>
    %32 = arith.maximumf %29, %31 : vector<2x16x8xf32>
    %c0_9 = arith.constant 0 : index
    %c0_10 = arith.constant 0 : index
    %c0_11 = arith.constant 0 : index
    %33 = vector.load %arg3[%c0_9, %c0_10, %c0_11] : memref<2x16x8xf32, #tpu.memory_space<vmem>>, vector<2x16x8xf32>
    tpu.vector_store %arg3[%c0_9, %c0_10, %c0_11], %32 {strides = array<i32>} : memref<2x16x8xf32, #tpu.memory_space<vmem>>, vector<2x16x8xf32>,
    return
  }
  func.func @transform_0(%arg0: i32, %arg1: i32) -> (i32, i32, i32, i32) {
    %c0_i32 = arith.constant 0 : i32
    %c0_i32_0 = arith.constant 0 : i32
    %c0_i32_1 = arith.constant 0 : i32
    return %arg0, %c0_i32, %c0_i32_0, %arg1 : i32, i32, i32, i32
  }
  func.func @transform_1(%arg0: i32, %arg1: i32) -> (i32, i32, i32) {
    %c0_i32 = arith.constant 0 : i32
    %c0_i32_0 = arith.constant 0 : i32
    return %arg0, %c0_i32, %arg1 : i32, i32, i32
  }
}

</mosaic_0001>

<llo_original>
// kernel: median_pool2d.1
$region0: #{median_pool2d.1}
  #allocation0 [shape = 'u32[]', space=smem, size = 0x4, offset = 0x4, fixed_abs, tag = 'smem constant byte address 0x4 - core index']
  #allocation1 [shape = 'u32[144,128]{1,0:T(1,128)}', space=vmem, size = 0x12000, scoped, tag = 'internal scratch']
  %s0 = inlined_call_operand.vmem [shape: f32[8,4,18,8], index: 0, kind: input, shape index: {}]
  %s1 = inlined_call_operand.vmem [shape: f32[16,16,8], index: 1, kind: output, shape index: {}]
  %s2 = sld [smem:[#allocation0]]
  $region37: #{median_pool2d.1} parent=0
    _
  %s4 = ssub.s32 1, %s2
  %s5 = scalar_select 0, %s4, %s2
  loop: start=0, step=1, limit=10
  $region2: #{median_pool2d.1} parent=0 // loop_pre_header
    _
  $region3: #{median_pool2d.1} parent=0 // loop_header
    %s7 = sphi 0, %s11
    %p8 = scmp.ge.s32.totalorder %s7, 10
    %s14 = sphi 0, %s26
    %s15 = sphi 0, %s22
    %s16 = sphi 0, %s14
    %s17 = sphi 0, %s15
    %s18 = sphi 0, %s16
    %s19 = sphi 0, %s17
    %s31 = sphi 0, %s33
    %s34 = sphi 0, %s31
    %s35 = sphi 0, %s34
    %s51 = sphi 0, %s35
    %s59 = sphi 0, %s61
    %s62 = sphi 0, %s59
    %s63 = sphi 0, %s62
    %s79 = sphi 0, %s63
  $region4: #{median_pool2d.1} parent=0 // loop_header_branch
    %10 = sbr.rel (%p8) target = $region8
  $region5: #{median_pool2d.1} parent=0 // loop_body
    %s12 = ssub.s32 %s7, 1
    %s13 = ssub.s32 %s7, 2
    %s20 = sadd.s32 1, %s15
    %p21 = scmp.ge.s32.totalorder %s20, 1
    %s22 = scalar_select %p21, 0, %s20
    %s23 = sadd.s32 1, %s14
    %s24 = scalar_select %p21, %s23, %s14
    %p25 = scmp.ge.s32.totalorder %s24, 8
    %s26 = scalar_select %p25, 0, %s24
    %s27 = ssub.s32 %s14, %s26
    %s28 = ssub.s32 %s15, %s22
    %s29 = sor.u32 %s27, %s28
    %p30 = scmp.eq.s32.totalorder %s29, 0
    %s32 = sadd.s32 %s31, 1
    %s33 = scalar_select %p30, %s31, %s32
    %p36 = pneg %p30
    %p37 = scmp.eq.s32.totalorder %s7, 7
    %p38 = por %p36, %p37
    %p39 = scmp.ne.s32.totalorder %s31, %s34
    %p40 = scmp.eq.s32.totalorder %s7, 0
    %p41 = por %p39, %p40
    %p42 = scmp.ne.s32.totalorder %s31, %s34
    %p43 = scmp.eq.s32.totalorder %s12, 7
    %p44 = por %p42, %p43
    %p45 = scmp.ne.s32.totalorder %s34, %s35
    %p46 = scmp.eq.s32.totalorder %s12, 0
    %p47 = por %p45, %p46
    %p48 = scmp.ne.s32.totalorder %s34, %s35
    %p49 = scmp.eq.s32.totalorder %s13, 7
    %p50 = por %p48, %p49
    %p52 = scmp.ne.s32.totalorder %s35, %s51
    %p53 = scmp.eq.s32.totalorder %s13, 0
    %p54 = por %p52, %p53
    %s55 = ssub.s32 %s14, %s26
    %s56 = ssub.s32 %s15, %s22
    %s57 = sor.u32 %s55, %s56
    %p58 = scmp.eq.s32.totalorder %s57, 0
    %s60 = sadd.s32 %s59, 1
    %s61 = scalar_select %p58, %s59, %s60
    %p64 = pneg %p58
    %p65 = scmp.eq.s32.totalorder %s7, 7
    %p66 = por %p64, %p65
    %p67 = scmp.ne.s32.totalorder %s59, %s62
    %p68 = scmp.eq.s32.totalorder %s7, 0
    %p69 = por %p67, %p68
    %p70 = scmp.ne.s32.totalorder %s59, %s62
    %p71 = scmp.eq.s32.totalorder %s12, 7
    %p72 = por %p70, %p71
    %p73 = scmp.ne.s32.totalorder %s62, %s63
    %p74 = scmp.eq.s32.totalorder %s12, 0
    %p75 = por %p73, %p74
    %p76 = scmp.ne.s32.totalorder %s62, %s63
    %p77 = scmp.eq.s32.totalorder %s13, 7
    %p78 = por %p76, %p77
    %p80 = scmp.ne.s32.totalorder %s63, %s79
    %p81 = scmp.eq.s32.totalorder %s13, 0
    %p82 = por %p80, %p81
    %p83 = scmp.le.s32.totalorder 1, %s7
    %p84 = scmp.lt.s32.totalorder %s7, 9
    %p85 = pnand %p83, %p84
    %p86 = pneg %p85
    // Predicated region
    $region9: #{median_pool2d.1} parent=5 // pred_check
      _
    $region10: #{median_pool2d.1} parent=5 // pred_check_branch
      %88 = sbr.rel (%p85) target = $region12
    $region11: #{median_pool2d.1} parent=5 // pred_region
      %s89 = ssub.s32 %s7, 1
    $region12: #{median_pool2d.1} parent=5 // pred_fallthru
      _
    %p90 = scmp.lt.s32.totalorder %s7, 8
    // Predicated region
    $region13: #{median_pool2d.1} parent=5 // pred_check
      %p91 = pneg %p90
    $region14: #{median_pool2d.1} parent=5 // pred_check_branch
      %93 = sbr.rel (%p91) target = $region16
    $region15: #{median_pool2d.1} parent=5 // pred_region
      // Predicated region
      $region17: #{median_pool2d.1} parent=15 // pred_check
        %p94 = pneg %p41
      $region18: #{median_pool2d.1} parent=15 // pred_check_branch
        %96 = sbr.rel (%p94) target = $region20
      $region19: #{median_pool2d.1} parent=15 // pred_region
        %p97 = scmp.lt.s32.totalorder %s14, 7
        %s98 = scalar_select %p97, %s14, 7
        %p99 = scmp.lt.s32.totalorder %s15, 0
        %s100 = scalar_select %p99, %s15, 0
        %s101 = smul.addr %s98, 12
        %s102 = sadd.s32 %s100, %s101
        %s103 = smul.addr %s102, 8
        %s104 = scalar_lea.vmem %s0, %s103
      $region20: #{median_pool2d.1} parent=15 // pred_fallthru
        _
    $region16: #{median_pool2d.1} parent=5 // pred_fallthru
      _
    %p105 = scmp.le.s32.totalorder 1, %s7
    %p106 = scmp.lt.s32.totalorder %s7, 9
    %p107 = pnand %p105, %p106
    %p108 = pneg %p107
    // Predicated region
    $region21: #{median_pool2d.1} parent=5 // pred_check
      _
    $region22: #{median_pool2d.1} parent=5 // pred_check_branch
      %110 = sbr.rel (%p107) target = $region24
    $region23: #{median_pool2d.1} parent=5 // pred_region
      %s111 = ssub.s32 %s7, 1
      %p112 = scmp.lt.s32.totalorder %s16, 7
      %s113 = scalar_select %p112, %s16, 7
      %p114 = scmp.lt.s32.totalorder %s17, 0
      %s115 = scalar_select %p114, %s17, 0
      %s116 = smul.addr %s113, 12
      %s117 = sadd.s32 %s115, %s116
      %s118 = smul.addr %s117, 8
      %s119 = scalar_lea.vmem %s0, %s118
      %p120 = pneg %p47
      %p121 = pneg %p44
      %p122 = pneg %p75
      %p123 = pneg %p72
      %s124 = smul.u32 2, %s16
      %p125 = scmp.lt.s32.totalorder %s124, 15
      %s126 = scalar_select %p125, %s124, 15
      %p127 = scmp.lt.s32.totalorder %s17, 0
      %s128 = scalar_select %p127, %s17, 0
      %s129 = smul.addr %s126, 2
      %s130 = sadd.s32 %s128, %s129
      %s131 = smul.addr %s130, 8
      %s132 = scalar_lea.vmem %s1, %s131
      %p133 = scmp.lt.s32.totalorder %s16, 7
      %s134 = scalar_select %p133, %s16, 7
      %p135 = scmp.lt.s32.totalorder %s17, 0
      %s136 = scalar_select %p135, %s17, 0
      %s137 = smul.addr %s134, 12
      %s138 = sadd.s32 %s136, %s137
      %s139 = smul.addr %s138, 8
      %s140 = scalar_lea.vmem %s0, %s139
      %s141 = smul.u32 2, %s16
      %p142 = scmp.lt.s32.totalorder %s141, 15
      %s143 = scalar_select %p142, %s141, 15
      %p144 = scmp.lt.s32.totalorder %s17, 0
      %s145 = scalar_select %p144, %s17, 0
      %s146 = smul.addr %s143, 2
      %s147 = sadd.s32 %s145, %s146
      %s148 = smul.addr %s147, 8
      %s149 = scalar_lea.vmem %s1, %s148
      %s150 = smul.u32 2, %s16
      %v151 = vld [vmem:[%s140] sm:$0xff]
      %v152 = vld [vmem:[%s140 + $0x8] sm:$0xff]
      %v153 = vld [vmem:[%s140 + $0x10] sm:$0x3]
      %v154 = vld [vmem:[%s140 + $0x18] sm:$0xff]
      %v155 = vld [vmem:[%s140 + $0x20] sm:$0xff]
      %v156 = vld [vmem:[%s140 + $0x28] sm:$0x3]
      %s157 = scalar_lea.vmem %s140, 24
      %v158 = vld [vmem:[%s157] sm:$0xff]
      %v159 = vld [vmem:[%s157 + $0x8] sm:$0xff]
      %v160 = vld [vmem:[%s157 + $0x10] sm:$0x3]
      %v161 = vld [vmem:[%s157 + $0x18] sm:$0xff]
      %v162 = vld [vmem:[%s157 + $0x20] sm:$0xff]
      %v163 = vld [vmem:[%s157 + $0x28] sm:$0x3]
      %s164 = scalar_lea.vmem %s140, 48
      %v165 = vld [vmem:[%s164] sm:$0xff]
      %v166 = vld [vmem:[%s164 + $0x8] sm:$0xff]
      %v167 = vld [vmem:[%s164 + $0x10] sm:$0x3]
      %v168 = vld [vmem:[%s164 + $0x18] sm:$0xff]
      %v169 = vld [vmem:[%s164 + $0x20] sm:$0xff]
      %v170 = vld [vmem:[%s164 + $0x28] sm:$0x3]
      %v171 = vmin.f32 %v151, %v158
      %v172 = vmin.f32 %v152, %v159
      %v173 = vmin.f32 %v153, %v160
      %v174 = vmin.f32 %v154, %v161
      %v175 = vmin.f32 %v155, %v162
      %v176 = vmin.f32 %v156, %v163
      %v177 = vmax.f32 %v151, %v158
      %v178 = vmax.f32 %v152, %v159
      %v179 = vmax.f32 %v153, %v160
      %v180 = vmax.f32 %v154, %v161
      %v181 = vmax.f32 %v155, %v162
      %v182 = vmax.f32 %v156, %v163
      %v183 = vmin.f32 %v177, %v165
      %v184 = vmin.f32 %v178, %v166
      %v185 = vmin.f32 %v179, %v167
      %v186 = vmin.f32 %v180, %v168
      %v187 = vmin.f32 %v181, %v169
      %v188 = vmin.f32 %v182, %v170
      %v189 = vmax.f32 %v177, %v165
      %v190 = vmax.f32 %v178, %v166
      %v191 = vmax.f32 %v179, %v167
      %v192 = vmax.f32 %v180, %v168
      %v193 = vmax.f32 %v181, %v169
      %v194 = vmax.f32 %v182, %v170
      %v195 = vmin.f32 %v171, %v183
      %v196 = vmin.f32 %v172, %v184
      %v197 = vmin.f32 %v173, %v185
      %v198 = vmin.f32 %v174, %v186
      %v199 = vmin.f32 %v175, %v187
      %v200 = vmin.f32 %v176, %v188
      %v201 = vmax.f32 %v171, %v183
      %v202 = vmax.f32 %v172, %v184
      %v203 = vmax.f32 %v173, %v185
      %v204 = vmax.f32 %v174, %v186
      %v205 = vmax.f32 %v175, %v187
      %v206 = vmax.f32 %v176, %v188
      %vm213 = vcmask 1046528
      %v214 = vrot.slane %v195, 1
      %v215 = vrot.slane %v196, 1
      %v216 = vsel %vm213, %v214, %v215
      %v217 = vrot.slane %v197, 1
      %v218 = vsel %vm213, %v215, %v217
      %v219 = vrot.slane %v198, 1
      %v220 = vrot.slane %v199, 1
      %v221 = vsel %vm213, %v219, %v220
      %v222 = vrot.slane %v200, 1
      %v223 = vsel %vm213, %v220, %v222
      %v228 = vmax.f32 %v195, %v216
      %v229 = vmax.f32 %v196, %v218
      %v230 = vmax.f32 %v198, %v221
      %v231 = vmax.f32 %v199, %v223
      %vm232 = vcmask 1045504
      %v233 = vrot.slane %v195, 2
      %v234 = vrot.slane %v196, 2
      %v235 = vsel %vm232, %v233, %v234
      %v236 = vrot.slane %v197, 2
      %v237 = vsel %vm232, %v234, %v236
      %v238 = vrot.slane %v198, 2
      %v239 = vrot.slane %v199, 2
      %v240 = vsel %vm232, %v238, %v239
      %v241 = vrot.slane %v200, 2
      %v242 = vsel %vm232, %v239, %v241
      %v247 = vmax.f32 %v228, %v235
      %v248 = vmax.f32 %v229, %v237
      %v249 = vmax.f32 %v230, %v240
      %v250 = vmax.f32 %v231, %v242
      %v257 = vrot.slane %v201, 1
      %v258 = vrot.slane %v202, 1
      %v259 = vsel %vm213, %v257, %v258
      %v260 = vrot.slane %v203, 1
      %v261 = vsel %vm213, %v258, %v260
      %v262 = vrot.slane %v204, 1
      %v263 = vrot.slane %v205, 1
      %v264 = vsel %vm213, %v262, %v263
      %v265 = vrot.slane %v206, 1
      %v266 = vsel %vm213, %v263, %v265
      %v271 = vmin.f32 %v201, %v259
      %v272 = vmin.f32 %v202, %v261
      %v273 = vmin.f32 %v204, %v264
      %v274 = vmin.f32 %v205, %v266
      %v275 = vmax.f32 %v201, %v259
      %v276 = vmax.f32 %v202, %v261
      %v277 = vmax.f32 %v204, %v264
      %v278 = vmax.f32 %v205, %v266
      %v279 = vrot.slane %v201, 2
      %v280 = vrot.slane %v202, 2
      %v281 = vsel %vm232, %v279, %v280
      %v282 = vrot.slane %v203, 2
      %v283 = vsel %vm232, %v280, %v282
      %v284 = vrot.slane %v204, 2
      %v285 = vrot.slane %v205, 2
      %v286 = vsel %vm232, %v284, %v285
      %v287 = vrot.slane %v206, 2
      %v288 = vsel %vm232, %v285, %v287
      %v293 = vmin.f32 %v275, %v281
      %v294 = vmin.f32 %v276, %v283
      %v295 = vmin.f32 %v277, %v286
      %v296 = vmin.f32 %v278, %v288
      %v297 = vmax.f32 %v271, %v293
      %v298 = vmax.f32 %v272, %v294
      %v299 = vmax.f32 %v273, %v295
      %v300 = vmax.f32 %v274, %v296
      %v307 = vrot.slane %v189, 1
      %v308 = vrot.slane %v190, 1
      %v309 = vsel %vm213, %v307, %v308
      %v310 = vrot.slane %v191, 1
      %v311 = vsel %vm213, %v308, %v310
      %v312 = vrot.slane %v192, 1
      %v313 = vrot.slane %v193, 1
      %v314 = vsel %vm213, %v312, %v313
      %v315 = vrot.slane %v194, 1
      %v316 = vsel %vm213, %v313, %v315
      %v321 = vmin.f32 %v189, %v309
      %v322 = vmin.f32 %v190, %v311
      %v323 = vmin.f32 %v192, %v314
      %v324 = vmin.f32 %v193, %v316
      %v325 = vrot.slane %v189, 2
      %v326 = vrot.slane %v190, 2
      %v327 = vsel %vm232, %v325, %v326
      %v328 = vrot.slane %v191, 2
      %v329 = vsel %vm232, %v326, %v328
      %v330 = vrot.slane %v192, 2
      %v331 = vrot.slane %v193, 2
      %v332 = vsel %vm232, %v330, %v331
      %v333 = vrot.slane %v194, 2
      %v334 = vsel %vm232, %v331, %v333
      %v339 = vmin.f32 %v321, %v327
      %v340 = vmin.f32 %v322, %v329
      %v341 = vmin.f32 %v323, %v332
      %v342 = vmin.f32 %v324, %v334
      %v343 = vmin.f32 %v247, %v297
      %v344 = vmin.f32 %v248, %v298
      %v345 = vmin.f32 %v249, %v299
      %v346 = vmin.f32 %v250, %v300
      %v347 = vmax.f32 %v247, %v297
      %v348 = vmax.f32 %v248, %v298
      %v349 = vmax.f32 %v249, %v299
      %v350 = vmax.f32 %v250, %v300
      %v351 = vmin.f32 %v347, %v339
      %v352 = vmin.f32 %v348, %v340
      %v353 = vmin.f32 %v349, %v341
      %v354 = vmin.f32 %v350, %v342
      %v355 = vmax.f32 %v343, %v351
      %v356 = vmax.f32 %v344, %v352
      %v357 = vmax.f32 %v345, %v353
      %v358 = vmax.f32 %v346, %v354
      %vm359 = vcmask 64512
      %360 = vst.msk [vmem:[%s149] sm:$0xff] %vm359, %v355
      %361 = vst.msk [vmem:[%s149 + $0x8] sm:$0xff] %vm359, %v356
      %362 = vst.msk [vmem:[%s149 + $0x10] sm:$0xff] %vm359, %v357
      %363 = vst.msk [vmem:[%s149 + $0x18] sm:$0xff] %vm359, %v358
      %s364 = smul.u32 2, %s16
      %p365 = scmp.lt.s32.totalorder %s364, 15
      %s366 = scalar_select %p365, %s364, 15
      %p367 = scmp.lt.s32.totalorder %s17, 0
      %s368 = scalar_select %p367, %s17, 0
      %s369 = smul.addr %s366, 2
      %s370 = sadd.s32 %s368, %s369
      %s371 = smul.addr %s370, 8
      %s372 = scalar_lea.vmem %s1, %s371
      // Predicated region
      $region25: #{median_pool2d.1} parent=23 // pred_check
        %p373 = pneg %p72
      $region26: #{median_pool2d.1} parent=23 // pred_check_branch
        %375 = sbr.rel (%p373) target = $region28
      $region27: #{median_pool2d.1} parent=23 // pred_region
        %s376 = smul.u32 2, %s16
      $region28: #{median_pool2d.1} parent=23 // pred_fallthru
        _
    $region24: #{median_pool2d.1} parent=5 // pred_fallthru
      _
    %p377 = scmp.le.s32.totalorder 2, %s7
    // Predicated region
    $region29: #{median_pool2d.1} parent=5 // pred_check
      %p378 = pneg %p377
    $region30: #{median_pool2d.1} parent=5 // pred_check_branch
      %380 = sbr.rel (%p378) target = $region32
    $region31: #{median_pool2d.1} parent=5 // pred_region
      %s381 = ssub.s32 %s7, 2
      // Predicated region
      $region33: #{median_pool2d.1} parent=31 // pred_check
        %p382 = pneg %p78
      $region34: #{median_pool2d.1} parent=31 // pred_check_branch
        %384 = sbr.rel (%p382) target = $region36
      $region35: #{median_pool2d.1} parent=31 // pred_region
        %s385 = smul.u32 2, %s18
        %p386 = scmp.lt.s32.totalorder %s385, 15
        %s387 = scalar_select %p386, %s385, 15
        %p388 = scmp.lt.s32.totalorder %s19, 0
        %s389 = scalar_select %p388, %s19, 0
        %s390 = smul.addr %s387, 2
        %s391 = sadd.s32 %s389, %s390
        %s392 = smul.addr %s391, 8
        %s393 = scalar_lea.vmem %s1, %s392
      $region36: #{median_pool2d.1} parent=31 // pred_fallthru
        _
    $region32: #{median_pool2d.1} parent=5 // pred_fallthru
      _
  $region6: #{median_pool2d.1} parent=0 // loop_footer
    %s11 = sadd.s32 1, %s7
  $region7: #{median_pool2d.1} parent=0 // loop_footer_branch
    %6 = sbr.rel target = $region3
  $region8: #{median_pool2d.1} parent=0 // loop_exit
    _

</llo_original>
